<compile_context>
chip_gen: v5e
topology: v5e:2x2
jax: 0.10.0
libtpu: 0.0.40
codegen_flags: <defaults>
</compile_context>

<pallas_src>
import functools

import jax
import jax.numpy as jnp
from jax.experimental import pallas as pl
from jax.experimental.pallas import tpu as pltpu


# ----------------------------------------------------------------------------
# Kernel 1: fused encoder — masked mean pooling over sequence + projection
# ----------------------------------------------------------------------------
def _encode_kernel(x_ref, mask_ref, w_ref, out_ref):
    x = x_ref[...].astype(jnp.float32)                 # (TB, S, H)
    m = mask_ref[...]                                  # (TB, S) f32
    denom = jnp.sum(m, axis=1, keepdims=True)          # (TB, 1)
    # Fold the divide into the mask: one EUP reciprocal + a (TB, S) multiply
    # instead of a (TB, H)-wide divide on the VPU.
    scale = m * pl.reciprocal(jnp.maximum(denom, 1.0), approx=True)
    pooled = jnp.sum(x * scale[:, :, None], axis=1)    # (TB, H) f32
    # Projection on the MXU: bf16 inputs, f32 accumulation.
    out_ref[...] = jnp.dot(
        pooled.astype(w_ref.dtype), w_ref[...],
        preferred_element_type=jnp.float32,
    ).astype(out_ref.dtype)


def _pick_batch_tile(batch, seq, hidden, dim, *, budget_bytes=4 * 1024 * 1024):
    """Largest batch tile whose pipelined block stays within a modest VMEM
    budget (safe under the 16 MiB v5e scoped default once double-buffered)."""
    per_row = seq * hidden * 2 + seq * 4 + dim * 2     # bf16 tokens dominate
    tb = max(8, budget_bytes // per_row)
    if tb >= batch:
        return batch
    return max(8, (tb // 8) * 8)                       # keep (8,128)-friendly


def encode(tokens, mask, weight):
    """tokens: (B, S, H) bf16, mask: (B, S) f32, weight: (H, D) bf16 -> (B, D) bf16."""
    B, S, H = tokens.shape
    D = weight.shape[1]
    tb = _pick_batch_tile(B, S, H, D)
    b_pad = pl.cdiv(B, tb) * tb
    if b_pad != B:
        tokens = jnp.pad(tokens, ((0, b_pad - B), (0, 0), (0, 0)))
        mask = jnp.pad(mask, ((0, b_pad - B), (0, 0)))

    out = pl.pallas_call(
        _encode_kernel,
        out_shape=jax.ShapeDtypeStruct((b_pad, D), jnp.bfloat16),
        grid_spec=pltpu.PrefetchScalarGridSpec(
            num_scalar_prefetch=0,
            grid=(b_pad // tb,),
            in_specs=[
                pl.BlockSpec((tb, S, H), lambda b: (b, 0, 0)),  # pipelined tokens
                pl.BlockSpec((tb, S), lambda b: (b, 0)),        # pipelined mask
                pl.BlockSpec((H, D), lambda b: (0, 0)),         # weight resident
            ],
            out_specs=pl.BlockSpec((tb, D), lambda b: (b, 0)),
        ),
        compiler_params=pltpu.CompilerParams(
            dimension_semantics=("parallel",),                  # megacore on v7x
        ),
    )(tokens, mask, weight)
    return out[:B]


# ----------------------------------------------------------------------------
# Kernel 2: similarity (q @ p.T) + contrastive cross-entropy, tiled over Np
# with an online logsumexp so the logits working set stays bounded in VMEM.
# ----------------------------------------------------------------------------
def _sim_loss_kernel(q_ref, pt_ref, tgt_ref, logits_ref, loss_ref,
                     m_sc, l_sc, t_sc, *, np_valid, tn):
    j = pl.program_id(0)

    @pl.when(j == 0)
    def _():
        m_sc[...] = jnp.full_like(m_sc, -jnp.inf)
        l_sc[...] = jnp.zeros_like(l_sc)
        t_sc[...] = jnp.zeros_like(t_sc)

    # similarity_fn(x, y) = x @ y.T ; RHS is pre-laid-out as (D, TN) so this is
    # a plain (M,K)x(K,N) MXU matmul with a lane-dense logits store.
    s = jnp.dot(q_ref[...], pt_ref[...],
                preferred_element_type=jnp.float32)            # (Nq, TN) f32
    col = j * tn + jax.lax.broadcasted_iota(jnp.int32, s.shape, 1)
    s = jnp.where(col < np_valid, s, -jnp.inf)                 # mask padded cols
    logits_ref[...] = s

    # Online logsumexp accumulation across the Np grid axis.
    m_new = jnp.maximum(m_sc[...], jnp.max(s, axis=-1, keepdims=True))
    alpha = jnp.exp(m_sc[...] - m_new)
    l_sc[...] = alpha * l_sc[...] + jnp.sum(jnp.exp(s - m_new), axis=-1,
                                            keepdims=True)
    m_sc[...] = m_new

    # Accumulate the target-column logit (exact iota == target gather).
    tgt = tgt_ref[...]                                         # (Nq, 1) int32
    t_sc[...] += jnp.sum(jnp.where(col == tgt, s, 0.0), axis=-1, keepdims=True)

    @pl.when(j == pl.num_programs(0) - 1)
    def _():
        lse = m_sc[...] + jnp.log(l_sc[...])                   # (Nq, 1)
        loss_ref[0, 0] = jnp.mean(lse - t_sc[...])


def similarity_and_loss(q_emb, p_emb, target_idx):
    Nq, D = q_emb.shape
    Np = p_emb.shape[0]
    # Tile the passage axis once it is large; small cases use a single block.
    tn = Np if Np <= 512 else 512
    np_pad = pl.cdiv(Np, tn) * tn
    p_t = jnp.transpose(p_emb)                 # (D, Np): (K, N) layout for MXU
    if np_pad != Np:
        p_t = jnp.pad(p_t, ((0, 0), (0, np_pad - Np)))

    kernel = functools.partial(_sim_loss_kernel, np_valid=Np, tn=tn)
    logits, loss = pl.pallas_call(
        kernel,
        out_shape=(
            jax.ShapeDtypeStruct((Nq, np_pad), jnp.float32),
            jax.ShapeDtypeStruct((1, 1), jnp.float32),
        ),
        grid_spec=pltpu.PrefetchScalarGridSpec(
            num_scalar_prefetch=0,
            grid=(np_pad // tn,),
            in_specs=[
                pl.BlockSpec((Nq, D), lambda j: (0, 0)),   # queries resident
                pl.BlockSpec((D, tn), lambda j: (0, j)),   # p.T tiles pipeline
                pl.BlockSpec((Nq, 1), lambda j: (0, 0)),   # targets resident
            ],
            out_specs=(
                pl.BlockSpec((Nq, tn), lambda j: (0, j)),  # lane-dense logits
                pl.BlockSpec((1, 1), lambda j: (0, 0)),    # scalar loss
            ),
            scratch_shapes=[
                pltpu.VMEM((Nq, 1), jnp.float32),          # running max
                pltpu.VMEM((Nq, 1), jnp.float32),          # running sum
                pltpu.VMEM((Nq, 1), jnp.float32),          # target logit
            ],
        ),
        compiler_params=pltpu.CompilerParams(
            dimension_semantics=("arbitrary",),            # reduction axis
        ),
    )(q_emb, p_t, target_idx)
    if np_pad != Np:
        logits = logits[:, :Np]
    return logits, loss[0, 0]


# ----------------------------------------------------------------------------
# Wrapper mirroring PretrainedRetriever.forward semantics (RetrieverOutput)
# ----------------------------------------------------------------------------
def retriever_forward(query, passage, label, weight, return_loss=True):
    """query/passage: dicts with 'inputs_embeds' (B,S,H) and 'attention_mask' (B,S).
    label: (NUM_QUERIES, k) relevancy scores."""
    w = weight.astype(jnp.bfloat16)
    q_emb = p_emb = logits = loss = None

    if (query is not None and passage is not None
            and query["inputs_embeds"].shape[1] == passage["inputs_embeds"].shape[1]):
        # Fuse the two encodes: one pipelined pass, weight DMA'd once, bigger M.
        tokens = jnp.concatenate(
            [query["inputs_embeds"], passage["inputs_embeds"]], axis=0
        ).astype(jnp.bfloat16)
        masks = jnp.concatenate(
            [query["attention_mask"], passage["attention_mask"]], axis=0
        ).astype(jnp.float32)
        emb = encode(tokens, masks, w)
        nq = query["inputs_embeds"].shape[0]
        q_emb, p_emb = emb[:nq], emb[nq:]
    else:
        if query is not None:
            q_emb = encode(query["inputs_embeds"].astype(jnp.bfloat16),
                           query["attention_mask"].astype(jnp.float32), w)
        if passage is not None:
            p_emb = encode(passage["inputs_embeds"].astype(jnp.bfloat16),
                           passage["attention_mask"].astype(jnp.float32), w)

    if q_emb is not None and p_emb is not None and label is not None:
        nq = q_emb.shape[0]
        k = p_emb.shape[0] // nq
        # target passage index = group offset + argmax relevancy within group
        tgt = (jnp.arange(nq, dtype=jnp.int32) * k
               + jnp.argmax(label, axis=-1).astype(jnp.int32)).reshape(nq, 1)
        logits, loss_val = similarity_and_loss(q_emb, p_emb, tgt)
        if return_loss:
            loss = loss_val
    return {"query": q_emb, "passage": p_emb, "logits": logits, "loss": loss}


if __name__ == "__main__":
    key = jax.random.PRNGKey(0)
    NQ, K, S, H, D = 2, 4, 8, 32, 32
    NP = NQ * K

    k1, k2, k3, k4 = jax.random.split(key, 4)
    q_tokens = jax.random.normal(k1, (NQ, S, H), dtype=jnp.float32)
    p_tokens = jax.random.normal(k2, (NP, S, H), dtype=jnp.float32)
    # deterministic attention masks (first few tokens valid)
    q_mask = (jnp.arange(S)[None, :] < jnp.array([[5], [7]])).astype(jnp.float32)
    p_lens = (3 + jnp.arange(NP) % 5).reshape(NP, 1)
    p_mask = (jnp.arange(S)[None, :] < p_lens).astype(jnp.float32)
    # deterministic projection weight (encoder params)
    weight = (jax.random.normal(k3, (H, D), dtype=jnp.float32) * 0.05)
    # relevancy labels: first passage of each group is the positive
    label = jnp.zeros((NQ, K), dtype=jnp.float32).at[:, 0].set(1.0)

    out = retriever_forward(
        query={"inputs_embeds": q_tokens, "attention_mask": q_mask},
        passage={"inputs_embeds": p_tokens, "attention_mask": p_mask},
        label=label,
        weight=weight,
        return_loss=True,
    )
    jax.block_until_ready(out["loss"])
    assert out["query"].shape == (NQ, D)
    assert out["passage"].shape == (NP, D)
    assert out["logits"].shape == (NQ, NP)
    assert out["loss"].shape == ()
    assert bool(jnp.isfinite(out["loss"]))
    print("KERNEL_OK")
</pallas_src>

<mosaic_0001>
module attributes {stable_mosaic.version = 11 : i64} {
  func.func @_encode_kernel(%arg0: i32, %arg1: memref<10x8x32xbf16, #tpu.memory_space<vmem>>, %arg2: memref<10x8xf32, #tpu.memory_space<vmem>>, %arg3: memref<32x32xbf16, #tpu.memory_space<vmem>>, %arg4: memref<10x32xbf16, #tpu.memory_space<vmem>>) attributes {dimension_semantics = [#tpu.dimension_semantics<parallel>], iteration_bounds = array<i64: 1>, scalar_prefetch = 0 : i64, scratch_operands = 0 : i64, tpu.core_type = #tpu.core_type<tc>, window_params = [{transform_indices = @transform_0, window_bounds = array<i64: 10, 8, 32>}, {transform_indices = @transform_1, window_bounds = array<i64: 10, 8>}, {pipeline_mode = #tpu.pipeline_mode<synchronous>, transform_indices = @transform_2, window_bounds = array<i64: 32, 32>}, {transform_indices = @transform_3, window_bounds = array<i64: 10, 32>}]} {
    %c0 = arith.constant 0 : index
    %c0_0 = arith.constant 0 : index
    %c0_1 = arith.constant 0 : index
    %0 = vector.load %arg1[%c0, %c0_0, %c0_1] : memref<10x8x32xbf16, #tpu.memory_space<vmem>>, vector<10x8x32xbf16>
    %1 = arith.extf %0 : vector<10x8x32xbf16> to vector<10x8x32xf32>
    %c0_2 = arith.constant 0 : index
    %c0_3 = arith.constant 0 : index
    %2 = vector.load %arg2[%c0_2, %c0_3] : memref<10x8xf32, #tpu.memory_space<vmem>>, vector<10x8xf32>
    %cst = arith.constant dense<0.000000e+00> : vector<10xf32>
    %3 = vector.multi_reduction <add>, %2, %cst [1] : vector<10x8xf32> to vector<10xf32>
    %4 = vector.shape_cast %3 : vector<10xf32> to vector<10x1xf32>
    %cst_4 = arith.constant 1.000000e+00 : f32
    %5 = vector.broadcast %cst_4 : f32 to vector<10x1xf32>
    %6 = arith.maximumf %4, %5 : vector<10x1xf32>
    %7 = tpu.reciprocal %6 {approx = true} : vector<10x1xf32> -> vector<10x1xf32>
    %8 = vector.broadcast %7 : vector<10x1xf32> to vector<10x8xf32>
    %9 = arith.mulf %2, %8 : vector<10x8xf32>
    %10 = vector.shape_cast %9 : vector<10x8xf32> to vector<10x8x1xf32>
    %11 = vector.broadcast %10 : vector<10x8x1xf32> to vector<10x8x32xf32>
    %12 = arith.mulf %1, %11 : vector<10x8x32xf32>
    %cst_5 = arith.constant dense<0.000000e+00> : vector<10x32xf32>
    %13 = vector.multi_reduction <add>, %12, %cst_5 [1] : vector<10x8x32xf32> to vector<10x32xf32>
    %14 = arith.truncf %13 : vector<10x32xf32> to vector<10x32xbf16>
    %c0_6 = arith.constant 0 : index
    %c0_7 = arith.constant 0 : index
    %15 = vector.load %arg3[%c0_6, %c0_7] : memref<32x32xbf16, #tpu.memory_space<vmem>>, vector<32x32xbf16>
    %cst_8 = arith.constant dense<0.000000e+00> : vector<10x32xf32>
    %16 = tpu.matmul %14, %15, %cst_8 {dimension_numbers = #tpu.dot_dimension_numbers<[1], [0], [0], [1], [0, 0, 1, 1], [], []>} : vector<10x32xbf16>, vector<32x32xbf16>, vector<10x32xf32> -> vector<10x32xf32>
    %17 = arith.truncf %16 : vector<10x32xf32> to vector<10x32xbf16>
    %c0_9 = arith.constant 0 : index
    %c0_10 = arith.constant 0 : index
    %18 = vector.load %arg4[%c0_9, %c0_10] : memref<10x32xbf16, #tpu.memory_space<vmem>>, vector<10x32xbf16>
    tpu.vector_store %arg4[%c0_9, %c0_10], %17 {strides = array<i32>} : memref<10x32xbf16, #tpu.memory_space<vmem>>, vector<10x32xbf16>,
    return
  }
  func.func @transform_0(%arg0: i32) -> (i32, i32, i32) {
    %c0_i32 = arith.constant 0 : i32
    %c0_i32_0 = arith.constant 0 : i32
    %c0_i32_1 = arith.constant 0 : i32
    return %arg0, %c0_i32, %c0_i32_0 : i32, i32, i32
  }
  func.func @transform_1(%arg0: i32) -> (i32, i32) {
    %c0_i32 = arith.constant 0 : i32
    %c0_i32_0 = arith.constant 0 : i32
    return %arg0, %c0_i32 : i32, i32
  }
  func.func @transform_2(%arg0: i32) -> (i32, i32) {
    %c0_i32 = arith.constant 0 : i32
    %c0_i32_0 = arith.constant 0 : i32
    %c0_i32_1 = arith.constant 0 : i32
    return %c0_i32, %c0_i32_0 : i32, i32
  }
  func.func @transform_3(%arg0: i32) -> (i32, i32) {
    %c0_i32 = arith.constant 0 : i32
    %c0_i32_0 = arith.constant 0 : i32
    return %arg0, %c0_i32 : i32, i32
  }
}

</mosaic_0001>

<llo_original>
// kernel: tpu_custom_call.1
$region0: #{tpu_custom_call.1}
  #allocation0 [shape = 'u32[]', space=smem, size = 0x4, offset = 0x4, fixed_abs, tag = 'smem constant byte address 0x4 - core index']
  #allocation1 [shape = 'u32[72,128]{1,0:T(1,128)}', space=vmem, size = 0x9000, scoped, tag = 'internal scratch']
  %s0 = inlined_call_operand.hbm [shape: bf16[10,8,32], index: 0, kind: input, shape index: {}]
  %s1 = inlined_call_operand.vmem [shape: f32[10,8], index: 1, kind: input, shape index: {}]
  %s2 = inlined_call_operand.vmem [shape: bf16[32,32], index: 2, kind: input, shape index: {}]
  %s3 = inlined_call_operand.hbm [shape: bf16[10,32], index: 3, kind: output, shape index: {}]
  %s4 = sld [smem:[#allocation0]]
  $region26: #{tpu_custom_call.1} parent=0
    _
  %s6 = ssub.s32 1, %s4
  %s7 = scalar_select 0, %s6, %s4
  $region1: #{tpu_custom_call.1} parent=0
    #allocation2 [shape = 'u8[20480]{0}', space=vmem, size = 0x5000, scoped, tag = 'input window, operand 0, single buffered']
    #allocation3 [shape = 's32[1]{0}', space=sflag, size = 0x4, scoped, tag = 'scoped memory for tpu_custom_call.1']
    #allocation4 [shape = 's32[1]{0}', space=sflag, size = 0x4, scoped, tag = 'scoped memory for tpu_custom_call.1']
    #allocation5 [shape = 'u8[4096]{0}', space=vmem, size = 0x1000, scoped, tag = 'output window, operand 0, single buffered']
    %8 = vsyncpa [#allocation3], 0
    %9 = vsyncpa [#allocation4], 0
    // Predicated region
    $region2: #{tpu_custom_call.1} parent=1 // pred_check
      _
    $region3: #{tpu_custom_call.1} parent=1 // pred_check_branch
      %11 = sbr.rel (0) target = $region5
    $region4: #{tpu_custom_call.1} parent=1 // pred_region
      %13 = vsyncadd [#allocation3], 0
      %s14 = sshll.u32 %s0, 4
      %s15 = int_to_ptr.hbm [resolvable:$true] %s14
      %s16 = sshll.u32 [#allocation2], 4
      %s17 = int_to_ptr.vmem [resolvable:$true] %s16
      %22 = dma.hbm_to_vmem [thread:$0]  %s15, 640, %s17, [#allocation3], 64, 64, 4
    $region5: #{tpu_custom_call.1} parent=1 // pred_fallthru
      _
    // Predicated region
    $region6: #{tpu_custom_call.1} parent=1 // pred_check
      _
    $region7: #{tpu_custom_call.1} parent=1 // pred_check_branch
      %24 = sbr.rel (0) target = $region9
    $region8: #{tpu_custom_call.1} parent=1 // pred_region
      _
    $region9: #{tpu_custom_call.1} parent=1 // pred_fallthru
      _
    // Predicated region
    $region10: #{tpu_custom_call.1} parent=1 // pred_check
      _
    $region11: #{tpu_custom_call.1} parent=1 // pred_check_branch
      %26 = sbr.rel (0) target = $region13
    $region12: #{tpu_custom_call.1} parent=1 // pred_region
      _
    $region13: #{tpu_custom_call.1} parent=1 // pred_fallthru
      _
    // Predicated region
    $region14: #{tpu_custom_call.1} parent=1 // pred_check
      _
    $region15: #{tpu_custom_call.1} parent=1 // pred_check_branch
      %28 = sbr.rel (0) target = $region17
    $region16: #{tpu_custom_call.1} parent=1 // pred_region
      %30 = dma.done [#allocation3], 640
    $region17: #{tpu_custom_call.1} parent=1 // pred_fallthru
      _
    %v32 = vld [vmem:[#allocation2] sm:$0xf]
    %v33 = vld [vmem:[#allocation2 + $0x4] sm:$0xf]
    %v34 = vld [vmem:[#allocation2 + $0x8] sm:$0xf]
    %v35 = vld [vmem:[#allocation2 + $0xc] sm:$0xf]
    %v36 = vld [vmem:[#allocation2 + $0x10] sm:$0xf]
    %v37 = vld [vmem:[#allocation2 + $0x14] sm:$0xf]
    %v38 = vld [vmem:[#allocation2 + $0x18] sm:$0xf]
    %v39 = vld [vmem:[#allocation2 + $0x1c] sm:$0xf]
    %v40 = vld [vmem:[#allocation2 + $0x20] sm:$0xf]
    %v41 = vld [vmem:[#allocation2 + $0x24] sm:$0xf]
    %v42 = vunpack.c.l.bf16 %v32
    %v43 = vunpack.c.l.bf16 %v33
    %v44 = vunpack.c.l.bf16 %v34
    %v45 = vunpack.c.l.bf16 %v35
    %v46 = vunpack.c.l.bf16 %v36
    %v47 = vunpack.c.l.bf16 %v37
    %v48 = vunpack.c.l.bf16 %v38
    %v49 = vunpack.c.l.bf16 %v39
    %v50 = vunpack.c.l.bf16 %v40
    %v51 = vunpack.c.l.bf16 %v41
    %v52 = vld [vmem:[%s1] sm:$0xff]
    %v53 = vld [vmem:[%s1 + $0x8] sm:$0x3]
    %vm54 = vcmask 64512
    %v55 = vsel %vm54, %v52, 0.0
    %56 = vadd.xlane.f32.xlu0 %v55
    %v57 = vpop.xlane.xlu0 %56
    %vm58 = vcmask 58368
    %v59 = vsel %vm58, %v53, 0.0
    %60 = vadd.xlane.f32.xlu0 %v59
    %v61 = vpop.xlane.xlu0 %60
    %v62 = vmax.f32 %v57, 1.0
    %v63 = vmax.f32 %v61, 1.0
    %v64 = vrcp.pop %v62
    %v65 = vrcp.pop %v63
    %v66 = vmul.f32 %v52, %v64
    %v67 = vmul.f32 %v53, %v65
    %v68 = vperm.slane %v66, 0
    %v69 = vlaneseq
    %v70 = vshrl.u32 %v69, 7
    %72 = vset.pattern.permute.xlu0 %v70
    %73 = vperm.xlu0 %72, %v68
    %v74 = vpop.permute.xlu0 %73
    %v75 = vperm.slane %v66, 1
    %v76 = vlaneseq
    %v77 = vshrl.u32 %v76, 7
    %79 = vset.pattern.permute.xlu0 %v77
    %80 = vperm.xlu0 %79, %v75
    %v81 = vpop.permute.xlu0 %80
    %v82 = vperm.slane %v66, 2
    %v83 = vlaneseq
    %v84 = vshrl.u32 %v83, 7
    %86 = vset.pattern.permute.xlu0 %v84
    %87 = vperm.xlu0 %86, %v82
    %v88 = vpop.permute.xlu0 %87
    %v89 = vperm.slane %v66, 3
    %v90 = vlaneseq
    %v91 = vshrl.u32 %v90, 7
    %93 = vset.pattern.permute.xlu0 %v91
    %94 = vperm.xlu0 %93, %v89
    %v95 = vpop.permute.xlu0 %94
    %v96 = vperm.slane %v66, 4
    %v97 = vlaneseq
    %v98 = vshrl.u32 %v97, 7
    %100 = vset.pattern.permute.xlu0 %v98
    %101 = vperm.xlu0 %100, %v96
    %v102 = vpop.permute.xlu0 %101
    %v103 = vperm.slane %v66, 5
    %v104 = vlaneseq
    %v105 = vshrl.u32 %v104, 7
    %107 = vset.pattern.permute.xlu0 %v105
    %108 = vperm.xlu0 %107, %v103
    %v109 = vpop.permute.xlu0 %108
    %v110 = vperm.slane %v66, 6
    %v111 = vlaneseq
    %v112 = vshrl.u32 %v111, 7
    %114 = vset.pattern.permute.xlu0 %v112
    %115 = vperm.xlu0 %114, %v110
    %v116 = vpop.permute.xlu0 %115
    %v117 = vperm.slane %v66, 7
    %v118 = vlaneseq
    %v119 = vshrl.u32 %v118, 7
    %121 = vset.pattern.permute.xlu0 %v119
    %122 = vperm.xlu0 %121, %v117
    %v123 = vpop.permute.xlu0 %122
    %v124 = vperm.slane %v67, 0
    %v125 = vlaneseq
    %v126 = vshrl.u32 %v125, 7
    %128 = vset.pattern.permute.xlu0 %v126
    %129 = vperm.xlu0 %128, %v124
    %v130 = vpop.permute.xlu0 %129
    %v131 = vperm.slane %v67, 1
    %v132 = vlaneseq
    %v133 = vshrl.u32 %v132, 7
    %135 = vset.pattern.permute.xlu0 %v133
    %136 = vperm.xlu0 %135, %v131
    %v137 = vpop.permute.xlu0 %136
    %v138 = vmul.f32 %v42, %v74
    %v139 = vmul.f32 %v43, %v81
    %v140 = vmul.f32 %v44, %v88
    %v141 = vmul.f32 %v45, %v95
    %v142 = vmul.f32 %v46, %v102
    %v143 = vmul.f32 %v47, %v109
    %v144 = vmul.f32 %v48, %v116
    %v145 = vmul.f32 %v49, %v123
    %v146 = vmul.f32 %v50, %v130
    %v147 = vmul.f32 %v51, %v137
    %vm148 = vcmask 261120
    %v149 = vsel %vm148, %v138, 0.0
    %v150 = vrot.slane %v149, 4
    %v151 = vadd.f32 %v149, %v150
    %v152 = vrot.slane %v151, 2
    %v153 = vadd.f32 %v151, %v152
    %v154 = vrot.slane %v153, 1
    %v155 = vadd.f32 %v153, %v154
    %v156 = vsel %vm148, %v139, 0.0
    %v157 = vrot.slane %v156, 4
    %v158 = vadd.f32 %v156, %v157
    %v159 = vrot.slane %v158, 2
    %v160 = vadd.f32 %v158, %v159
    %v161 = vrot.slane %v160, 1
    %v162 = vadd.f32 %v160, %v161
    %v163 = vsel %vm148, %v140, 0.0
    %v164 = vrot.slane %v163, 4
    %v165 = vadd.f32 %v163, %v164
    %v166 = vrot.slane %v165, 2
    %v167 = vadd.f32 %v165, %v166
    %v168 = vrot.slane %v167, 1
    %v169 = vadd.f32 %v167, %v168
    %v170 = vsel %vm148, %v141, 0.0
    %v171 = vrot.slane %v170, 4
    %v172 = vadd.f32 %v170, %v171
    %v173 = vrot.slane %v172, 2
    %v174 = vadd.f32 %v172, %v173
    %v175 = vrot.slane %v174, 1
    %v176 = vadd.f32 %v174, %v175
    %v177 = vsel %vm148, %v142, 0.0
    %v178 = vrot.slane %v177, 4
    %v179 = vadd.f32 %v177, %v178
    %v180 = vrot.slane %v179, 2
    %v181 = vadd.f32 %v179, %v180
    %v182 = vrot.slane %v181, 1
    %v183 = vadd.f32 %v181, %v182
    %v184 = vsel %vm148, %v143, 0.0
    %v185 = vrot.slane %v184, 4
    %v186 = vadd.f32 %v184, %v185
    %v187 = vrot.slane %v186, 2
    %v188 = vadd.f32 %v186, %v187
    %v189 = vrot.slane %v188, 1
    %v190 = vadd.f32 %v188, %v189
    %v191 = vsel %vm148, %v144, 0.0
    %v192 = vrot.slane %v191, 4
    %v193 = vadd.f32 %v191, %v192
    %v194 = vrot.slane %v193, 2
    %v195 = vadd.f32 %v193, %v194
    %v196 = vrot.slane %v195, 1
    %v197 = vadd.f32 %v195, %v196
    %v198 = vsel %vm148, %v145, 0.0
    %v199 = vrot.slane %v198, 4
    %v200 = vadd.f32 %v198, %v199
    %v201 = vrot.slane %v200, 2
    %v202 = vadd.f32 %v200, %v201
    %v203 = vrot.slane %v202, 1
    %v204 = vadd.f32 %v202, %v203
    %v205 = vsel %vm148, %v146, 0.0
    %v206 = vrot.slane %v205, 4
    %v207 = vadd.f32 %v205, %v206
    %v208 = vrot.slane %v207, 2
    %v209 = vadd.f32 %v207, %v208
    %v210 = vrot.slane %v209, 1
    %v211 = vadd.f32 %v209, %v210
    %v212 = vsel %vm148, %v147, 0.0
    %v213 = vrot.slane %v212, 4
    %v214 = vadd.f32 %v212, %v213
    %v215 = vrot.slane %v214, 2
    %v216 = vadd.f32 %v214, %v215
    %v217 = vrot.slane %v216, 1
    %v218 = vadd.f32 %v216, %v217
    %v219 = vpack.c.bf16 %v155, %v155
    %v220 = vpack.c.bf16 %v162, %v162
    %v221 = vpack.c.bf16 %v169, %v169
    %v222 = vpack.c.bf16 %v176, %v176
    %v223 = vpack.c.bf16 %v183, %v183
    %v224 = vpack.c.bf16 %v190, %v190
    %v225 = vpack.c.bf16 %v197, %v197
    %v226 = vpack.c.bf16 %v204, %v204
    %v227 = vpack.c.bf16 %v211, %v211
    %v228 = vpack.c.bf16 %v218, %v218
    %v229 = vld [vmem:[%s2] sm:$0xf]
    %v230 = vld [vmem:[%s2 + $0x4] sm:$0xf]
    %v231 = vld [vmem:[%s2 + $0x8] sm:$0xf]
    %v232 = vld [vmem:[%s2 + $0xc] sm:$0xf]
    %v243 = vunpack.c.l.b16 %v219
    %v244 = vunpack.c.l.b16 %v220
    %v245 = vunpack.c.l.b16 %v221
    %v246 = vunpack.c.l.b16 %v222
    %v247 = vunpack.c.l.b16 %v223
    %v248 = vunpack.c.l.b16 %v224
    %v249 = vunpack.c.l.b16 %v225
    %v250 = vunpack.c.l.b16 %v226
    %v251 = vunpack.c.l.b16 %v227
    %v252 = vunpack.c.l.b16 %v228
    %vm253 = vcmask 1041409
    %v254 = vsel %vm253, %v244, %v243
    %vm255 = vcmask 1042434
    %v256 = vsel %vm255, %v245, %v254
    %vm257 = vcmask 1043459
    %v258 = vsel %vm257, %v246, %v256
    %vm259 = vcmask 1044484
    %v260 = vsel %vm259, %v247, %v258
    %vm261 = vcmask 1045509
    %v262 = vsel %vm261, %v248, %v260
    %vm263 = vcmask 1046534
    %v264 = vsel %vm263, %v249, %v262
    %vm265 = vcmask 1047559
    %v266 = vsel %vm265, %v250, %v264
    %v267 = vsel %vm253, %v252, %v251
    %v268 = vpack.c.b16 %v267, %v266
    %v273 = vunpack.c.l.b16 %v229
    %v274 = vunpack.c.l.b16 %v230
    %v275 = vunpack.c.l.b16 %v231
    %v276 = vunpack.c.l.b16 %v232
    %v277 = vpack.c.b16 %v274, %v273
    %v278 = vpack.c.b16 %v276, %v275
    %v282 = vsel %vm148, %v268, 0
    %284 = vmatpush.bf16.msra.mxu0 0
    %285 = vmatpush.bf16.msra.mxu0 0
    %286 = vmatpush.bf16.msra.mxu0 0
    %287 = vmatpush.bf16.msra.mxu0 0
    %288 = vmatpush.bf16.msra.mxu0 0
    %289 = vmatpush.bf16.msra.mxu0 0
    %290 = vmatpush.bf16.msra.mxu0 %v278
    %291 = vmatpush.bf16.msra.mxu0 %v277
    %292 = vmatmul.bf16.gmra.mxu0 %v282
    %v293 = vpop.f32.mrf.mxu0
    %v294 = vadd.f32 0.0, %v293
    %v295 = vpop.f32.mrf.mxu0
    %v296 = vadd.f32 0.0, %v295
    %297 = vdwg.mxu0
    %v298 = vpack.c.bf16 %v294, %v294
    %v299 = vpack.c.bf16 %v296, %v296
    %vm300 = vcmask 257024
    %301 = vst.msk [vmem:[#allocation5] sm:$0xf] %vm300, %v298
    %vm302 = vcmask 253952
    %303 = vst.msk [vmem:[#allocation5 + $0x4] sm:$0x1] %vm302, %v299
    // Predicated region
    $region18: #{tpu_custom_call.1} parent=1 // pred_check
      _
    $region19: #{tpu_custom_call.1} parent=1 // pred_check_branch
      %305 = sbr.rel (0) target = $region21
    $region20: #{tpu_custom_call.1} parent=1 // pred_region
      %307 = vsyncadd [#allocation4], 0
      %s308 = sshll.u32 [#allocation5], 4
      %s309 = int_to_ptr.vmem [resolvable:$true] %s308
      %s310 = sshll.u32 %s3, 4
      %s311 = int_to_ptr.hbm [resolvable:$true] %s310
      %316 = dma.vmem_to_hbm [thread:$0]  %s309, 128, %s311, [#allocation4], 64, 64, 4
    $region21: #{tpu_custom_call.1} parent=1 // pred_fallthru
      _
    // Predicated region
    $region22: #{tpu_custom_call.1} parent=1 // pred_check
      _
    $region23: #{tpu_custom_call.1} parent=1 // pred_check_branch
      %318 = sbr.rel (0) target = $region25
    $region24: #{tpu_custom_call.1} parent=1 // pred_region
      %320 = dma.done [#allocation4], 128
    $region25: #{tpu_custom_call.1} parent=1 // pred_fallthru
      _
    %321 = vsyncpa [#allocation3], 1
    %322 = vsyncpa [#allocation4], 1

</llo_original>
